<compile_context>
chip_gen: v7x
topology: tpu7x:2x2x1
jax: 0.10.0
libtpu: 0.0.40
codegen_flags: <defaults>
</compile_context>

<pallas_src>
import functools

import jax
import jax.numpy as jnp
from jax.experimental import pallas as pl
from jax.experimental.pallas import tpu as pltpu

_LANE = 128


# ----------------------------------------------------------------------------
# Kernel: full forward hot path for one batch tile of `tm` lanes.
# packed_ref holds all weights/biases in one tiny VMEM block:
#   cols [0:H)      -> w1  (H, H)   hidden_layer1 weight, PyTorch (out, in)
#   col  H          -> w0  (H, 1)   hidden_layer0 weight (fan_in = 1)
#   col  H+1        -> b0  (H, 1)
#   col  H+2        -> b1  (H, 1)
#   col  H+3        -> wo  (H, 1)   output_layer weight stored as a column
#   col  H+4        -> bo  broadcast column (scalar output bias)
# ----------------------------------------------------------------------------
def _mlp_kernel(x_ref, packed_ref, o_ref, *, H):
    x_row = x_ref[...]                                   # (1, tm) f32

    w1 = packed_ref[:, :H]                               # (H, H)
    w0 = packed_ref[:, H:H + 1]                          # (H, 1)
    b0 = packed_ref[:, H + 1:H + 2]                      # (H, 1)
    b1 = packed_ref[:, H + 2:H + 3]                      # (H, 1)
    wo = packed_ref[:, H + 3:H + 4]                      # (H, 1)
    bo = packed_ref[:1, H + 4:H + 5]                     # (1, 1)

    def sigmoid(z):
        # one EUP transcendental instead of exp + add + divide
        return 0.5 * (jnp.tanh(0.5 * z) + 1.0)

    # hidden layer 0: fan_in = 1 -> VPU broadcast outer product (no MXU push).
    #   (H,1) * (1,tm) + (H,1) -> (H,tm)
    h = sigmoid(w0 * x_row + b0)

    # hidden layer 1: the only real contraction -> MXU, f32 accumulate.
    #   (H,H) @ (H,tm) + (H,1) -> (H,tm)
    h = sigmoid(jnp.dot(w1, h, preferred_element_type=jnp.float32) + b1)

    # NOTE: hidden_layer2 exists as a parameter in the PyTorch module but is
    # never applied in forward() (loop runs to len(hidden) - 1) -> skipped
    # here on purpose to match semantics exactly.

    # output layer: fan_out = 1 -> elementwise mul + sublane (XLU) reduce,
    # producing a lane-dense (1, tm) result for an unmasked store.
    out = jnp.sum(h * wo, axis=0, keepdims=True) + bo
    o_ref[...] = out.astype(o_ref.dtype)


def _pack_params(params):
    """Concatenate all weights/biases into a single (H, 128) f32 block."""
    H = params["w1"].shape[0]
    cols = jnp.concatenate(
        [params["w1"],                                    # (H, H)
         params["w0"],                                    # (H, 1)
         params["b0"],                                    # (H, 1)
         params["b1"],                                    # (H, 1)
         params["wo"],                                    # (H, 1)
         jnp.broadcast_to(params["bo"], (H, 1))],         # bo replicated column
        axis=1)                                           # (H, H+5)
    width = max(_LANE, pl.cdiv(H + 5, _LANE) * _LANE)
    return jnp.pad(cols, ((0, 0), (0, width - (H + 5))))  # (H, width)


def var_rbf_mlp_forward(x, params, *, tm_max=32768):
    """Pallas forward pass. x may be any shape; it is flattened to (N,) and the
    result returned as (N, 1), matching the PyTorch module."""
    x_flat = jnp.asarray(x, jnp.float32).reshape(-1)
    N = x_flat.shape[0]
    H = params["w1"].shape[0]

    # ---- tile selection (all static Python ints) ----------------------------
    lanes = pl.cdiv(N, _LANE) * _LANE                     # N rounded to lanes
    min_steps = 2 if lanes >= 2 * _LANE else 1            # >=2 steps: v7x 2-TC
    g = max(min_steps, pl.cdiv(lanes, tm_max))            # number of grid steps
    if g > 1 and g % 2:
        g += 1                                            # even split across TCs
    tm = pl.cdiv(pl.cdiv(lanes, g), _LANE) * _LANE        # lane-multiple tile
    n_pad = g * tm                                        # grid = n_pad // tm = g

    # ---- avoid the pad copy when N is already tile aligned ------------------
    if n_pad == N:
        x2 = x_flat.reshape(1, N)
    else:
        x2 = jnp.pad(x_flat, (0, n_pad - N)).reshape(1, n_pad)

    packed = _pack_params(params)                         # (H, 128) f32
    P = packed.shape[1]

    out = pl.pallas_call(
        functools.partial(_mlp_kernel, H=H),
        out_shape=jax.ShapeDtypeStruct((1, n_pad), jnp.float32),
        grid=(g,),
        in_specs=[
            pl.BlockSpec((1, tm), lambda i: (0, i)),      # x tile (lane-dense)
            pl.BlockSpec((H, P), lambda i: (0, 0)),       # packed weights/biases
        ],
        out_specs=pl.BlockSpec((1, tm), lambda i: (0, i)),
        compiler_params=pltpu.CompilerParams(
            dimension_semantics=("parallel",),            # megacore-shardable
            vmem_limit_bytes=48 * 1024 * 1024,            # headroom (v5e = 16 MiB default)
        ),
    )(x2, packed)

    out2 = out.reshape(-1, 1)                             # (n_pad, 1)
    return out2 if n_pad == N else out2[:N]               # (N, 1)


# ----------------------------------------------------------------------------
# Deterministic parameter init (mimics nn.Linear default uniform(-k, k),
# k = 1/sqrt(fan_in)); weights stored in (out, in) / column layout (see above).
# ----------------------------------------------------------------------------
def init_params(key, hidden=32):
    ks = jax.random.split(key, 8)

    def linear(kw, kb, fan_in, fan_out):
        bound = 1.0 / jnp.sqrt(fan_in)
        w = jax.random.uniform(kw, (fan_out, fan_in), jnp.float32, -bound, bound)
        b = jax.random.uniform(kb, (fan_out, 1), jnp.float32, -bound, bound)
        return w, b

    w0, b0 = linear(ks[0], ks[1], 1, hidden)        # hidden_layer0: 1 -> H, (H,1)
    w1, b1 = linear(ks[2], ks[3], hidden, hidden)   # hidden_layer1: H -> H, (H,H)
    # hidden_layer2 (H -> H) is initialized in the PyTorch module but unused
    # in forward(); materialized here only to keep the RNG stream analogous.
    _w2, _b2 = linear(ks[4], ks[5], hidden, hidden)
    wo_row, bo = linear(ks[6], ks[7], hidden, 1)    # output_layer: H -> 1, (1,H)
    wo = wo_row.reshape(hidden, 1)                  # store as column (H,1)
    bo = bo.reshape(1, 1)
    return {"w0": w0, "b0": b0, "w1": w1, "b1": b1, "wo": wo, "bo": bo}


def reference_forward(x, params):
    """Pure-JAX reference matching the PyTorch forward (hidden_layer2 skipped)."""
    x2 = jnp.asarray(x, jnp.float32).reshape(-1, 1)
    h = jax.nn.sigmoid(x2 @ params["w0"].T + params["b0"].T)
    h = jax.nn.sigmoid(h @ params["w1"].T + params["b1"].T)
    return h @ params["wo"] + params["bo"]


# TODO(synk): fit()/predict() training loop (Adam + MSELoss) is host-side
# training logic, not a forward-pass op -> not translated to Pallas.

if __name__ == "__main__":
    key = jax.random.PRNGKey(0)
    k_param, k_x1, k_x2, k_x3 = jax.random.split(key, 4)

    hidden = 32
    params = init_params(k_param, hidden=hidden)

    # Case 1: small, tile-unaligned batch (pad path, 2 grid steps of 256 lanes).
    x_small = jax.random.normal(k_x1, (300,), jnp.float32)
    out_small = jax.block_until_ready(var_rbf_mlp_forward(x_small, params))
    ref_small = reference_forward(x_small, params)
    assert out_small.shape == (300, 1)
    assert jnp.allclose(out_small, ref_small, atol=1e-5, rtol=1e-5), \
        "mismatch vs JAX reference (small batch)"

    # Case 2: exactly tile-aligned batch (no-pad / no-slice fast path).
    x_aligned = jax.random.normal(k_x3, (512,), jnp.float32)
    out_aligned = jax.block_until_ready(var_rbf_mlp_forward(x_aligned, params))
    ref_aligned = reference_forward(x_aligned, params)
    assert out_aligned.shape == (512, 1)
    assert jnp.allclose(out_aligned, ref_aligned, atol=1e-5, rtol=1e-5), \
        "mismatch vs JAX reference (aligned batch)"

    # Case 3: multi-tile grid path with a small tm_max override (4 tiles of 256).
    x_big = jax.random.normal(k_x2, (1000,), jnp.float32)
    out_big = jax.block_until_ready(var_rbf_mlp_forward(x_big, params, tm_max=256))
    ref_big = reference_forward(x_big, params)
    assert out_big.shape == (1000, 1)
    assert jnp.allclose(out_big, ref_big, atol=1e-5, rtol=1e-5), \
        "mismatch vs JAX reference (multi-tile batch)"

    print("KERNEL_OK")
</pallas_src>

<mosaic_0001>
module attributes {stable_mosaic.version = 11 : i64} {
  func.func @_mlp_kernel(%arg0: i32, %arg1: memref<1x256xf32, #tpu.memory_space<vmem>>, %arg2: memref<32x128xf32, #tpu.memory_space<vmem>>, %arg3: memref<1x256xf32, #tpu.memory_space<vmem>>) attributes {dimension_semantics = [#tpu.dimension_semantics<parallel>], iteration_bounds = array<i64: 2>, scalar_prefetch = 0 : i64, scratch_operands = 0 : i64, tpu.core_type = #tpu.core_type<tc>, window_params = [{transform_indices = @transform_0, window_bounds = array<i64: 1, 256>}, {pipeline_mode = #tpu.pipeline_mode<synchronous>, transform_indices = @transform_1, window_bounds = array<i64: 32, 128>}, {transform_indices = @transform_2, window_bounds = array<i64: 1, 256>}]} {
    %c0 = arith.constant 0 : index
    %c0_0 = arith.constant 0 : index
    %0 = vector.load %arg1[%c0, %c0_0] : memref<1x256xf32, #tpu.memory_space<vmem>>, vector<1x256xf32>
    %c0_1 = arith.constant 0 : index
    %c0_2 = arith.constant 0 : index
    %1 = vector.load %arg2[%c0_1, %c0_2] : memref<32x128xf32, #tpu.memory_space<vmem>>, vector<32x32xf32>
    %c0_3 = arith.constant 0 : index
    %c32 = arith.constant 32 : index
    %2 = vector.load %arg2[%c0_3, %c32] : memref<32x128xf32, #tpu.memory_space<vmem>>, vector<32x1xf32>
    %c0_4 = arith.constant 0 : index
    %c33 = arith.constant 33 : index
    %3 = vector.load %arg2[%c0_4, %c33] : memref<32x128xf32, #tpu.memory_space<vmem>>, vector<32x1xf32>
    %c0_5 = arith.constant 0 : index
    %c34 = arith.constant 34 : index
    %4 = vector.load %arg2[%c0_5, %c34] : memref<32x128xf32, #tpu.memory_space<vmem>>, vector<32x1xf32>
    %c0_6 = arith.constant 0 : index
    %c35 = arith.constant 35 : index
    %5 = vector.load %arg2[%c0_6, %c35] : memref<32x128xf32, #tpu.memory_space<vmem>>, vector<32x1xf32>
    %c0_7 = arith.constant 0 : index
    %c36 = arith.constant 36 : index
    %6 = vector.load %arg2[%c0_7, %c36] : memref<32x128xf32, #tpu.memory_space<vmem>>, vector<1x1xf32>
    %7 = vector.broadcast %2 : vector<32x1xf32> to vector<32x256xf32>
    %8 = vector.broadcast %0 : vector<1x256xf32> to vector<32x256xf32>
    %9 = arith.mulf %7, %8 : vector<32x256xf32>
    %10 = vector.broadcast %3 : vector<32x1xf32> to vector<32x256xf32>
    %11 = arith.addf %9, %10 : vector<32x256xf32>
    %cst = arith.constant 5.000000e-01 : f32
    %12 = vector.broadcast %cst : f32 to vector<32x256xf32>
    %13 = arith.mulf %12, %11 : vector<32x256xf32>
    %14 = math.tanh %13 : vector<32x256xf32>
    %cst_8 = arith.constant 1.000000e+00 : f32
    %15 = vector.broadcast %cst_8 : f32 to vector<32x256xf32>
    %16 = arith.addf %14, %15 : vector<32x256xf32>
    %cst_9 = arith.constant 5.000000e-01 : f32
    %17 = vector.broadcast %cst_9 : f32 to vector<32x256xf32>
    %18 = arith.mulf %17, %16 : vector<32x256xf32>
    %cst_10 = arith.constant dense<0.000000e+00> : vector<32x256xf32>
    %19 = tpu.matmul %1, %18, %cst_10 {dimension_numbers = #tpu.dot_dimension_numbers<[1], [0], [0], [1], [0, 0, 1, 1], [], []>} : vector<32x32xf32>, vector<32x256xf32>, vector<32x256xf32> -> vector<32x256xf32>
    %20 = vector.broadcast %4 : vector<32x1xf32> to vector<32x256xf32>
    %21 = arith.addf %19, %20 : vector<32x256xf32>
    %cst_11 = arith.constant 5.000000e-01 : f32
    %22 = vector.broadcast %cst_11 : f32 to vector<32x256xf32>
    %23 = arith.mulf %22, %21 : vector<32x256xf32>
    %24 = math.tanh %23 : vector<32x256xf32>
    %cst_12 = arith.constant 1.000000e+00 : f32
    %25 = vector.broadcast %cst_12 : f32 to vector<32x256xf32>
    %26 = arith.addf %24, %25 : vector<32x256xf32>
    %cst_13 = arith.constant 5.000000e-01 : f32
    %27 = vector.broadcast %cst_13 : f32 to vector<32x256xf32>
    %28 = arith.mulf %27, %26 : vector<32x256xf32>
    %29 = vector.broadcast %5 : vector<32x1xf32> to vector<32x256xf32>
    %30 = arith.mulf %28, %29 : vector<32x256xf32>
    %cst_14 = arith.constant dense<0.000000e+00> : vector<256xf32>
    %31 = vector.multi_reduction <add>, %30, %cst_14 [0] : vector<32x256xf32> to vector<256xf32>
    %32 = vector.shape_cast %31 : vector<256xf32> to vector<1x256xf32>
    %33 = vector.broadcast %6 : vector<1x1xf32> to vector<1x256xf32>
    %34 = arith.addf %32, %33 : vector<1x256xf32>
    %c0_15 = arith.constant 0 : index
    %c0_16 = arith.constant 0 : index
    %35 = vector.load %arg3[%c0_15, %c0_16] : memref<1x256xf32, #tpu.memory_space<vmem>>, vector<1x256xf32>
    tpu.vector_store %arg3[%c0_15, %c0_16], %34 {strides = array<i32>} : memref<1x256xf32, #tpu.memory_space<vmem>>, vector<1x256xf32>,
    return
  }
  func.func @transform_0(%arg0: i32) -> (i32, i32) {
    %c0_i32 = arith.constant 0 : i32
    %c0_i32_0 = arith.constant 0 : i32
    return %c0_i32, %arg0 : i32, i32
  }
  func.func @transform_1(%arg0: i32) -> (i32, i32) {
    %c0_i32 = arith.constant 0 : i32
    %c0_i32_0 = arith.constant 0 : i32
    %c0_i32_1 = arith.constant 0 : i32
    return %c0_i32, %c0_i32_0 : i32, i32
  }
  func.func @transform_2(%arg0: i32) -> (i32, i32) {
    %c0_i32 = arith.constant 0 : i32
    %c0_i32_0 = arith.constant 0 : i32
    return %c0_i32, %arg0 : i32, i32
  }
}

</mosaic_0001>

<llo_original>
// kernel: tpu_custom_call.1
$region0: #{tpu_custom_call.1}
  #allocation0 [shape = 'u32[]', space=smem, size = 0x4, offset = 0x4, fixed_abs, tag = 'smem constant byte address 0x4 - core index']
  #allocation1 [shape = 'u32[144,128]{1,0:T(1,128)}', space=vmem, size = 0x12000, scoped, tag = 'internal scratch']
  %s0 = inlined_call_operand.hbm [shape: f32[1,512], index: 0, kind: input, shape index: {}]
  %s1 = inlined_call_operand.hbm [shape: f32[32,128], index: 1, kind: input, shape index: {}]
  %s2 = inlined_call_operand.hbm [shape: f32[1,512], index: 2, kind: output, shape index: {}]
  %s3 = sld [smem:[#allocation0]]
  $region49: #{tpu_custom_call.1} parent=0
    _
  %s5 = ssub.s32 1, %s3
  %s6 = scalar_select 0, %s5, %s3
  $region1: #{tpu_custom_call.1} parent=0
    #allocation2 [shape = 'u8[2048]{0}', space=vmem, size = 0x800, scoped, tag = 'input window, operand 0']
    #allocation3 [shape = 's32[2]{0}', space=sflag, size = 0x8, scoped, tag = 'scoped memory for tpu_custom_call.1']
    #allocation4 [shape = 's32[2]{0}', space=sflag, size = 0x8, scoped, tag = 'scoped memory for tpu_custom_call.1']
    #allocation5 [shape = 'u8[16384]{0}', space=vmem, size = 0x4000, scoped, tag = 'input window, operand 1, single buffered']
    #allocation6 [shape = 's32[1]{0}', space=sflag, size = 0x4, scoped, tag = 'scoped memory for tpu_custom_call.1']
    #allocation7 [shape = 'u8[2048]{0}', space=vmem, size = 0x800, scoped, tag = 'output window, operand 0']
    %7 = vsyncpa [#allocation3], 0
    %s8 = scalar_lea.sflag [#allocation3], 1
    %9 = vsyncpa %s8, 0
    %10 = vsyncpa [#allocation6], 0
    %11 = vsyncpa [#allocation4], 0
    %s12 = scalar_lea.sflag [#allocation4], 1
    %13 = vsyncpa %s12, 0
    loop: start=0, step=1, limit=4
    $region2: #{tpu_custom_call.1} parent=1 // loop_pre_header
      _
    $region3: #{tpu_custom_call.1} parent=1 // loop_header
      %s15 = sphi 0, %s19
      %p16 = scmp.ge.s32.totalorder %s15, 4
      %s25 = sphi 0, %s27
      %s28 = sphi 0, %s25
      %s29 = sphi 0, %s28
      %s45 = sphi 0, %s29
      %s49 = sphi 0, %s49
      %s51 = sphi 0, %s49
      %s52 = sphi 0, %s51
      %s66 = sphi 0, %s52
      %s72 = sphi 0, %s74
      %s75 = sphi 0, %s72
      %s76 = sphi 0, %s75
      %s92 = sphi 0, %s76
    $region4: #{tpu_custom_call.1} parent=1 // loop_header_branch
      %18 = sbr.rel (%p16) target = $region8
    $region5: #{tpu_custom_call.1} parent=1 // loop_body
      %s20 = ssub.s32 %s15, 1
      %s21 = ssub.s32 %s15, 2
      %s22 = sadd.s32 %s15, 1
      %s23 = ssub.s32 %s15, %s22
      %p24 = scmp.eq.s32.totalorder %s23, 0
      %s26 = sadd.s32 %s25, 1
      %s27 = scalar_select %p24, %s25, %s26
      %p30 = pneg %p24
      %p31 = scmp.eq.s32.totalorder %s15, 1
      %p32 = por %p30, %p31
      %p33 = scmp.ne.s32.totalorder %s25, %s28
      %p34 = scmp.eq.s32.totalorder %s15, 0
      %p35 = por %p33, %p34
      %p36 = scmp.ne.s32.totalorder %s25, %s28
      %p37 = scmp.eq.s32.totalorder %s20, 1
      %p38 = por %p36, %p37
      %p39 = scmp.ne.s32.totalorder %s28, %s29
      %p40 = scmp.eq.s32.totalorder %s20, 0
      %p41 = por %p39, %p40
      %p42 = scmp.ne.s32.totalorder %s28, %s29
      %p43 = scmp.eq.s32.totalorder %s21, 1
      %p44 = por %p42, %p43
      %p46 = scmp.ne.s32.totalorder %s29, %s45
      %p47 = scmp.eq.s32.totalorder %s21, 0
      %p48 = por %p46, %p47
      %s50 = sadd.s32 %s49, 1
      %p53 = scmp.eq.s32.totalorder %s15, 1
      %p54 = scmp.ne.s32.totalorder %s49, %s51
      %p55 = scmp.eq.s32.totalorder %s15, 0
      %p56 = por %p54, %p55
      %p57 = scmp.ne.s32.totalorder %s49, %s51
      %p58 = scmp.eq.s32.totalorder %s20, 1
      %p59 = por %p57, %p58
      %p60 = scmp.ne.s32.totalorder %s51, %s52
      %p61 = scmp.eq.s32.totalorder %s20, 0
      %p62 = por %p60, %p61
      %p63 = scmp.ne.s32.totalorder %s51, %s52
      %p64 = scmp.eq.s32.totalorder %s21, 1
      %p65 = por %p63, %p64
      %p67 = scmp.ne.s32.totalorder %s52, %s66
      %p68 = scmp.eq.s32.totalorder %s21, 0
      %p69 = por %p67, %p68
      %s70 = ssub.s32 %s15, %s22
      %p71 = scmp.eq.s32.totalorder %s70, 0
      %s73 = sadd.s32 %s72, 1
      %s74 = scalar_select %p71, %s72, %s73
      %p77 = pneg %p71
      %p78 = scmp.eq.s32.totalorder %s15, 1
      %p79 = por %p77, %p78
      %p80 = scmp.ne.s32.totalorder %s72, %s75
      %p81 = scmp.eq.s32.totalorder %s15, 0
      %p82 = por %p80, %p81
      %p83 = scmp.ne.s32.totalorder %s72, %s75
      %p84 = scmp.eq.s32.totalorder %s20, 1
      %p85 = por %p83, %p84
      %p86 = scmp.ne.s32.totalorder %s75, %s76
      %p87 = scmp.eq.s32.totalorder %s20, 0
      %p88 = por %p86, %p87
      %p89 = scmp.ne.s32.totalorder %s75, %s76
      %p90 = scmp.eq.s32.totalorder %s21, 1
      %p91 = por %p89, %p90
      %p93 = scmp.ne.s32.totalorder %s76, %s92
      %p94 = scmp.eq.s32.totalorder %s21, 0
      %p95 = por %p93, %p94
      %p96 = scmp.le.s32.totalorder 1, %s15
      %p97 = scmp.lt.s32.totalorder %s15, 3
      %p98 = pnand %p96, %p97
      %p99 = pneg %p98
      // Predicated region
      $region9: #{tpu_custom_call.1} parent=5 // pred_check
        _
      $region10: #{tpu_custom_call.1} parent=5 // pred_check_branch
        %101 = sbr.rel (%p98) target = $region12
      $region11: #{tpu_custom_call.1} parent=5 // pred_region
        %s102 = ssub.s32 %s15, 1
        // Predicated region
        $region13: #{tpu_custom_call.1} parent=11 // pred_check
          %p103 = pneg %p62
        $region14: #{tpu_custom_call.1} parent=11 // pred_check_branch
          %105 = sbr.rel (%p103) target = $region16
        $region15: #{tpu_custom_call.1} parent=11 // pred_region
          %s107 = ssub.s32 512, 512
          %108 = vsyncadd [#allocation6], %s107
          %s109 = sshll.u32 [#allocation5], 4
          %s110 = int_to_ptr.vmem [resolvable:$true] %s109
          %115 = dma.hbm_to_vmem [thread:$0]  %s1, 512, %s110, [#allocation6], 128, 128, 8
        $region16: #{tpu_custom_call.1} parent=11 // pred_fallthru
          _
      $region12: #{tpu_custom_call.1} parent=5 // pred_fallthru
        _
      %p116 = scmp.lt.s32.totalorder %s15, 2
      // Predicated region
      $region17: #{tpu_custom_call.1} parent=5 // pred_check
        %p117 = pneg %p116
      $region18: #{tpu_custom_call.1} parent=5 // pred_check_branch
        %119 = sbr.rel (%p117) target = $region20
      $region19: #{tpu_custom_call.1} parent=5 // pred_region
        // Predicated region
        $region21: #{tpu_custom_call.1} parent=19 // pred_check
          %p120 = pneg %p35
        $region22: #{tpu_custom_call.1} parent=19 // pred_check_branch
          %122 = sbr.rel (%p120) target = $region24
        $region23: #{tpu_custom_call.1} parent=19 // pred_region
          %s123 = sand.u32 %s25, 1
          %s124 = scalar_lea.sflag [#allocation3], %s123
          %s125 = sand.u32 %s25, 1
          %s126 = smul.addr %s125, 2
          %s127 = scalar_lea.vmem [#allocation2], %s126
          %s128 = smul.u32 2, %s15
          %s130 = ssub.s32 32, 32
          %131 = vsyncadd %s124, %s130
          %s132 = smul.addr %s128, 16
          %s133 = scalar_lea.hbm %s0, %s132
          %s135 = sshll.u32 %s127, 4
          %s136 = int_to_ptr.vmem [resolvable:$true] %s135
          %138 = dma.hbm_to_vmem [thread:$0]  %s133, 32, %s136, %s124
        $region24: #{tpu_custom_call.1} parent=19 // pred_fallthru
          _
      $region20: #{tpu_custom_call.1} parent=5 // pred_fallthru
        _
      %p139 = scmp.le.s32.totalorder 1, %s15
      %p140 = scmp.lt.s32.totalorder %s15, 3
      %p141 = pnand %p139, %p140
      %p142 = pneg %p141
      // Predicated region
      $region25: #{tpu_custom_call.1} parent=5 // pred_check
        _
      $region26: #{tpu_custom_call.1} parent=5 // pred_check_branch
        %144 = sbr.rel (%p141) target = $region28
      $region27: #{tpu_custom_call.1} parent=5 // pred_region
        %s145 = ssub.s32 %s15, 1
        %s146 = sand.u32 %s28, 1
        %s147 = scalar_lea.sflag [#allocation3], %s146
        %s148 = sand.u32 %s28, 1
        %s149 = smul.addr %s148, 2
        %s150 = scalar_lea.vmem [#allocation2], %s149
        // Predicated region
        $region29: #{tpu_custom_call.1} parent=27 // pred_check
          %p151 = pneg %p41
        $region30: #{tpu_custom_call.1} parent=27 // pred_check_branch
          %153 = sbr.rel (%p151) target = $region32
        $region31: #{tpu_custom_call.1} parent=27 // pred_region
          %154 = dma.done %s147, 32
        $region32: #{tpu_custom_call.1} parent=27 // pred_fallthru
          _
        // Predicated region
        $region33: #{tpu_custom_call.1} parent=27 // pred_check
          %p155 = pneg %p62
        $region34: #{tpu_custom_call.1} parent=27 // pred_check_branch
          %157 = sbr.rel (%p155) target = $region36
        $region35: #{tpu_custom_call.1} parent=27 // pred_region
          %158 = dma.done [#allocation6], 512
        $region36: #{tpu_custom_call.1} parent=27 // pred_fallthru
          _
        %s159 = sand.u32 %s28, 1
        %s160 = scalar_lea.sflag [#allocation3], %s159
        %s161 = sand.u32 %s28, 1
        %s162 = smul.addr %s161, 2
        %s163 = scalar_lea.vmem [#allocation2], %s162
        %p164 = pneg %p41
        %p165 = pneg %p38
        %p166 = pneg %p62
        %p167 = pneg %p59
        %p168 = pneg %p88
        %p169 = pneg %p85
        %s170 = sand.u32 %s75, 1
        %s171 = scalar_lea.sflag [#allocation4], %s170
        %s172 = sand.u32 %s75, 1
        %s173 = smul.addr %s172, 2
        %s174 = scalar_lea.vmem [#allocation7], %s173
        %s175 = smul.u32 2, %s20
        %s176 = smul.u32 2, %s20
        %v177 = vld [vmem:[%s150] sm:$0x3]
        %v178 = vld [vmem:[#allocation5] sm:$0xff]
        %v179 = vld [vmem:[#allocation5 + $0x8] sm:$0xff]
        %v180 = vld [vmem:[#allocation5 + $0x10] sm:$0xff]
        %v181 = vld [vmem:[#allocation5 + $0x18] sm:$0xff]
        %v182 = vld [vmem:[#allocation5] sm:$0x1]
        %184 = vset.pattern.permute.xlu0 32
        %185 = vperm.xlu0 %184, %v178
        %v186 = vpop.permute.xlu0 %185
        %189 = vset.pattern.permute.xlu0 32
        %190 = vperm.xlu0 %189, %v179
        %v191 = vpop.permute.xlu0 %190
        %194 = vset.pattern.permute.xlu0 32
        %195 = vperm.xlu0 %194, %v180
        %v196 = vpop.permute.xlu0 %195
        %199 = vset.pattern.permute.xlu0 32
        %200 = vperm.xlu0 %199, %v181
        %v201 = vpop.permute.xlu0 %200
        %v204 = vlaneseq
        %v205 = vshrl.u32 %v204, 7
        %v206 = vsub.s32 0, %v205
        %v207 = vrot.slane %v177, %v206
        %v208 = vlaneseq
        %v209 = vshrl.u32 %v208, 7
        %v210 = vsub.s32 1, %v209
        %v211 = vrot.slane %v177, %v210
        %v214 = vmul.f32 %v186, %v207
        %v215 = vmul.f32 %v186, %v211
        %v216 = vmul.f32 %v191, %v207
        %v217 = vmul.f32 %v191, %v211
        %v218 = vmul.f32 %v196, %v207
        %v219 = vmul.f32 %v196, %v211
        %v220 = vmul.f32 %v201, %v207
        %v221 = vmul.f32 %v201, %v211
        %222 = vset.pattern.permute.xlu0 33
        %223 = vperm.xlu0 %222, %v178
        %v224 = vpop.permute.xlu0 %223
        %226 = vset.pattern.permute.xlu0 33
        %227 = vperm.xlu0 %226, %v179
        %v228 = vpop.permute.xlu0 %227
        %230 = vset.pattern.permute.xlu0 33
        %231 = vperm.xlu0 %230, %v180
        %v232 = vpop.permute.xlu0 %231
        %234 = vset.pattern.permute.xlu0 33
        %235 = vperm.xlu0 %234, %v181
        %v236 = vpop.permute.xlu0 %235
        %v238 = vadd.f32 %v214, %v224
        %v239 = vadd.f32 %v215, %v224
        %v240 = vadd.f32 %v216, %v228
        %v241 = vadd.f32 %v217, %v228
        %v242 = vadd.f32 %v218, %v232
        %v243 = vadd.f32 %v219, %v232
        %v244 = vadd.f32 %v220, %v236
        %v245 = vadd.f32 %v221, %v236
        %v246 = vmul.f32 %v238, 0.5
        %v247 = vmul.f32 %v239, 0.5
        %v248 = vmul.f32 %v240, 0.5
        %v249 = vmul.f32 %v241, 0.5
        %v250 = vmul.f32 %v242, 0.5
        %v251 = vmul.f32 %v243, 0.5
        %v252 = vmul.f32 %v244, 0.5
        %v253 = vmul.f32 %v245, 0.5
        %v254 = vtanh.pop %v246
        %v255 = vtanh.pop %v247
        %v256 = vtanh.pop %v248
        %v257 = vtanh.pop %v249
        %v258 = vtanh.pop %v250
        %v259 = vtanh.pop %v251
        %v260 = vtanh.pop %v252
        %v261 = vtanh.pop %v253
        %v262 = vadd.f32 %v254, 1.0
        %v263 = vadd.f32 %v255, 1.0
        %v264 = vadd.f32 %v256, 1.0
        %v265 = vadd.f32 %v257, 1.0
        %v266 = vadd.f32 %v258, 1.0
        %v267 = vadd.f32 %v259, 1.0
        %v268 = vadd.f32 %v260, 1.0
        %v269 = vadd.f32 %v261, 1.0
        %v270 = vmul.f32 %v262, 0.5
        %v271 = vmul.f32 %v263, 0.5
        %v272 = vmul.f32 %v264, 0.5
        %v273 = vmul.f32 %v265, 0.5
        %v274 = vmul.f32 %v266, 0.5
        %v275 = vmul.f32 %v267, 0.5
        %v276 = vmul.f32 %v268, 0.5
        %v277 = vmul.f32 %v269, 0.5
        %278 = vset.pattern.permute.xlu0 34
        %279 = vperm.xlu0 %278, %v178
        %v280 = vpop.permute.xlu0 %279
        %282 = vset.pattern.permute.xlu0 34
        %283 = vperm.xlu0 %282, %v179
        %v284 = vpop.permute.xlu0 %283
        %286 = vset.pattern.permute.xlu0 34
        %287 = vperm.xlu0 %286, %v180
        %v288 = vpop.permute.xlu0 %287
        %290 = vset.pattern.permute.xlu0 34
        %291 = vperm.xlu0 %290, %v181
        %v292 = vpop.permute.xlu0 %291
        %vm294 = vcmask 261120
        %v295 = vsel %vm294, %v178, 0
        %v297 = vsel %vm294, %v179, 0
        %v299 = vsel %vm294, %v180, 0
        %v301 = vsel %vm294, %v181, 0
        %303 = vmatprep.subr.mxu0 %v271
        %304 = vmatpush1.msra.mxu0 %v270
        %305 = vmatprep.subr.mxu0 %v273
        %306 = vmatpush1.msra.mxu0 %v272
        %307 = vmatprep.subr.mxu0 %v275
        %308 = vmatpush1.msra.mxu0 %v274
        %309 = vmatprep.subr.mxu0 %v277
        %310 = vmatpush1.msra.mxu0 %v276
        %311 = vmatprep.subr.mxu0 0.0
        %312 = vmatpush1.msra.mxu0 0.0
        %313 = vmatprep.subr.mxu0 0.0
        %314 = vmatpush1.msra.mxu0 0.0
        %315 = vmatprep.subr.mxu0 0.0
        %316 = vmatpush1.msra.mxu0 0.0
        %317 = vmatprep.subr.mxu0 0.0
        %318 = vmatpush1.msra.mxu0 0.0
        %319 = vmatprep.subr.mxu0 0.0
        %320 = vmatpush1.msra.mxu0 0.0
        %321 = vmatprep.subr.mxu0 0.0
        %322 = vmatpush1.msra.mxu0 0.0
        %323 = vmatprep.subr.mxu0 0.0
        %324 = vmatpush1.msra.mxu0 0.0
        %325 = vmatprep.subr.mxu0 0.0
        %326 = vmatpush1.msra.mxu0 0.0
        %327 = vmatprep.subr.mxu0 0.0
        %328 = vmatpush1.msra.mxu0 0.0
        %329 = vmatprep.subr.mxu0 0.0
        %330 = vmatpush1.msra.mxu0 0.0
        %331 = vmatprep.subr.mxu0 0.0
        %332 = vmatpush1.msra.mxu0 0.0
        %333 = vmatprep.subr.mxu0 0.0
        %334 = vmatpush1.msra.mxu0 0.0
        %335 = vmatprep.subr.mxu0 0.0
        %336 = vmatpush1.msra.mxu0 0.0
        %337 = vmatprep.subr.mxu0 0.0
        %338 = vmatpush1.msra.mxu0 0.0
        %339 = vmatprep.subr.mxu0 0.0
        %340 = vmatpush1.msra.mxu0 0.0
        %341 = vmatprep.subr.mxu0 0.0
        %342 = vmatpush1.msra.mxu0 0.0
        %343 = vmatprep.subr.mxu0 0.0
        %344 = vmatpush1.msra.mxu0 0.0
        %345 = vmatprep.subr.mxu0 0.0
        %346 = vmatpush1.msra.mxu0 0.0
        %347 = vmatprep.subr.mxu0 0.0
        %348 = vmatpush1.msra.mxu0 0.0
        %349 = vmatprep.subr.mxu0 0.0
        %350 = vmatpush1.msra.mxu0 0.0
        %351 = vmatprep.subr.mxu0 0.0
        %352 = vmatpush1.msra.mxu0 0.0
        %353 = vmatprep.subr.mxu0 0.0
        %354 = vmatpush1.msra.mxu0 0.0
        %355 = vmatprep.subr.mxu0 0.0
        %356 = vmatpush1.msra.mxu0 0.0
        %357 = vmatprep.subr.mxu0 0.0
        %358 = vmatpush1.msra.mxu0 0.0
        %359 = vmatprep.subr.mxu0 0.0
        %360 = vmatpush1.msra.mxu0 0.0
        %361 = vmatprep.subr.mxu0 0.0
        %362 = vmatpush1.msra.mxu0 0.0
        %363 = vmatprep.subr.mxu0 0.0
        %364 = vmatpush1.msra.mxu0 0.0
        %365 = vmatprep.subr.mxu0 0.0
        %366 = vmatpush1.msra.mxu0 0.0
        %367 = vmatprep.mubr.f32.mxu0 0.0
        %368 = vmatmul.mubr.f32.gmra.mrb[0].mxu0 %v295
        %v369 = vpop.f32.mrb[0].mxu0
        %v370 = vadd.f32 %v280, %v369
        %v371 = vpop.f32.mrb[0].mxu0
        %v372 = vadd.f32 %v280, %v371
        %373 = vmatprep.mubr.f32.mxu0 0.0
        %374 = vmatmul.mubr.f32.gmra.mrb[0].mxu0 %v297
        %v375 = vpop.f32.mrb[0].mxu0
        %v376 = vadd.f32 %v284, %v375
        %v377 = vpop.f32.mrb[0].mxu0
        %v378 = vadd.f32 %v284, %v377
        %379 = vmatprep.mubr.f32.mxu0 0.0
        %380 = vmatmul.mubr.f32.gmra.mrb[0].mxu0 %v299
        %v381 = vpop.f32.mrb[0].mxu0
        %v382 = vadd.f32 %v288, %v381
        %v383 = vpop.f32.mrb[0].mxu0
        %v384 = vadd.f32 %v288, %v383
        %385 = vmatprep.mubr.f32.mxu0 0.0
        %386 = vmatmul.mubr.f32.gmra.mrb[0].mxu0 %v301
        %v387 = vpop.f32.mrb[0].mxu0
        %v388 = vadd.f32 %v292, %v387
        %v389 = vpop.f32.mrb[0].mxu0
        %v390 = vadd.f32 %v292, %v389
        %391 = vdwg.mxu0
        %v392 = vmul.f32 %v370, 0.5
        %v393 = vmul.f32 %v372, 0.5
        %v394 = vmul.f32 %v376, 0.5
        %v395 = vmul.f32 %v378, 0.5
        %v396 = vmul.f32 %v382, 0.5
        %v397 = vmul.f32 %v384, 0.5
        %v398 = vmul.f32 %v388, 0.5
        %v399 = vmul.f32 %v390, 0.5
        %v400 = vtanh.pop %v392
        %v401 = vtanh.pop %v393
        %v402 = vtanh.pop %v394
        %v403 = vtanh.pop %v395
        %v404 = vtanh.pop %v396
        %v405 = vtanh.pop %v397
        %v406 = vtanh.pop %v398
        %v407 = vtanh.pop %v399
        %v408 = vadd.f32 %v400, 1.0
        %v409 = vadd.f32 %v401, 1.0
        %v410 = vadd.f32 %v402, 1.0
        %v411 = vadd.f32 %v403, 1.0
        %v412 = vadd.f32 %v404, 1.0
        %v413 = vadd.f32 %v405, 1.0
        %v414 = vadd.f32 %v406, 1.0
        %v415 = vadd.f32 %v407, 1.0
        %v416 = vmul.f32 %v408, 0.5
        %v417 = vmul.f32 %v409, 0.5
        %v418 = vmul.f32 %v410, 0.5
        %v419 = vmul.f32 %v411, 0.5
        %v420 = vmul.f32 %v412, 0.5
        %v421 = vmul.f32 %v413, 0.5
        %v422 = vmul.f32 %v414, 0.5
        %v423 = vmul.f32 %v415, 0.5
        %424 = vset.pattern.permute.xlu0 35
        %425 = vperm.xlu0 %424, %v178
        %v426 = vpop.permute.xlu0 %425
        %428 = vset.pattern.permute.xlu0 35
        %429 = vperm.xlu0 %428, %v179
        %v430 = vpop.permute.xlu0 %429
        %432 = vset.pattern.permute.xlu0 35
        %433 = vperm.xlu0 %432, %v180
        %v434 = vpop.permute.xlu0 %433
        %436 = vset.pattern.permute.xlu0 35
        %437 = vperm.xlu0 %436, %v181
        %v438 = vpop.permute.xlu0 %437
        %v440 = vmul.f32 %v416, %v426
        %v441 = vmul.f32 %v417, %v426
        %v442 = vmul.f32 %v418, %v430
        %v443 = vmul.f32 %v419, %v430
        %v444 = vmul.f32 %v420, %v434
        %v445 = vmul.f32 %v421, %v434
        %v446 = vmul.f32 %v422, %v438
        %v447 = vmul.f32 %v423, %v438
        %v448 = vadd.f32 %v440, %v442
        %v449 = vadd.f32 %v448, %v444
        %v450 = vadd.f32 %v449, %v446
        %v451 = vrot.slane %v450, 4
        %v452 = vadd.f32 %v450, %v451
        %v453 = vrot.slane %v452, 2
        %v454 = vadd.f32 %v452, %v453
        %v455 = vrot.slane %v454, 1
        %v456 = vadd.f32 %v454, %v455
        %v457 = vadd.f32 %v441, %v443
        %v458 = vadd.f32 %v457, %v445
        %v459 = vadd.f32 %v458, %v447
        %v460 = vrot.slane %v459, 4
        %v461 = vadd.f32 %v459, %v460
        %v462 = vrot.slane %v461, 2
        %v463 = vadd.f32 %v461, %v462
        %v464 = vrot.slane %v463, 1
        %v465 = vadd.f32 %v463, %v464
        %467 = vset.pattern.permute.xlu0 36
        %468 = vperm.xlu0 %467, %v182
        %v469 = vpop.permute.xlu0 %468
        %v471 = vadd.f32 %v456, %v469
        %v472 = vadd.f32 %v465, %v469
        %v475 = vcombine.low %v471, %v472
        %v477 = vunpack.c.l.s4 1966171168
        %v478 = vunpack.c.0.s8 %v477
        %v479 = vlaneseq
        %v480 = vshrl.u32 %v479, 7
        %v481 = vsub.s32 %v478, %v480
        %v482 = vrot.slane %v475, %v481
        %v484 = vunpack.c.l.s4 1966171168
        %v485 = vunpack.c.0.s8 %v484
        %v486 = vlaneseq
        %v487 = vshrl.u32 %v486, 7
        %v488 = vsub.s32 %v485, %v487
        %v489 = vrot.slane %v482, %v488
        %v491 = vlaneseq
        %vm492 = vcmp.ge.s32.totalorder %v491, 0
        %vm493 = vcmp.lt.s32.totalorder %v491, 256
        %vm494 = vmand %vm492, %vm493
        %495 = vst.msk [vmem:[%s174] sm:$0x3] %vm494, %v489
        %s496 = sand.u32 %s75, 1
        %s497 = scalar_lea.sflag [#allocation4], %s496
        %s498 = sand.u32 %s75, 1
        %s499 = smul.addr %s498, 2
        %s500 = scalar_lea.vmem [#allocation7], %s499
        // Predicated region
        $region37: #{tpu_custom_call.1} parent=27 // pred_check
          %p501 = pneg %p85
        $region38: #{tpu_custom_call.1} parent=27 // pred_check_branch
          %503 = sbr.rel (%p501) target = $region40
        $region39: #{tpu_custom_call.1} parent=27 // pred_region
          %s504 = smul.u32 2, %s20
          %s506 = ssub.s32 32, 32
          %507 = vsyncadd %s497, %s506
          %s508 = smul.addr %s504, 16
          %s509 = scalar_lea.hbm %s2, %s508
          %s511 = sshll.u32 %s500, 4
          %s512 = int_to_ptr.vmem [resolvable:$true] %s511
          %514 = dma.vmem_to_hbm [thread:$0]  %s512, 32, %s509, %s497
        $region40: #{tpu_custom_call.1} parent=27 // pred_fallthru
          _
      $region28: #{tpu_custom_call.1} parent=5 // pred_fallthru
        _
      %p515 = scmp.le.s32.totalorder 2, %s15
      // Predicated region
      $region41: #{tpu_custom_call.1} parent=5 // pred_check
        %p516 = pneg %p515
      $region42: #{tpu_custom_call.1} parent=5 // pred_check_branch
        %518 = sbr.rel (%p516) target = $region44
      $region43: #{tpu_custom_call.1} parent=5 // pred_region
        %s519 = ssub.s32 %s15, 2
        // Predicated region
        $region45: #{tpu_custom_call.1} parent=43 // pred_check
          %p520 = pneg %p91
        $region46: #{tpu_custom_call.1} parent=43 // pred_check_branch
          %522 = sbr.rel (%p520) target = $region48
        $region47: #{tpu_custom_call.1} parent=43 // pred_region
          %s523 = sand.u32 %s76, 1
          %s524 = scalar_lea.sflag [#allocation4], %s523
          %s525 = sand.u32 %s76, 1
          %s526 = smul.addr %s525, 2
          %s527 = scalar_lea.vmem [#allocation7], %s526
          %528 = dma.done %s524, 32
        $region48: #{tpu_custom_call.1} parent=43 // pred_fallthru
          _
      $region44: #{tpu_custom_call.1} parent=5 // pred_fallthru
        _
    $region6: #{tpu_custom_call.1} parent=1 // loop_footer
      %s19 = sadd.s32 1, %s15
    $region7: #{tpu_custom_call.1} parent=1 // loop_footer_branch
      %14 = sbr.rel target = $region3
    $region8: #{tpu_custom_call.1} parent=1 // loop_exit
      _
    %529 = vsyncpa [#allocation3], 1
    %s530 = scalar_lea.sflag [#allocation3], 1
    %531 = vsyncpa %s530, 1
    %532 = vsyncpa [#allocation6], 1
    %533 = vsyncpa [#allocation4], 1
    %s534 = scalar_lea.sflag [#allocation4], 1
    %535 = vsyncpa %s534, 1

</llo_original>
